<compile_context>
chip_gen: v7x
topology: tpu7x:2x2x1
jax: 0.10.0
libtpu: 0.0.40
codegen_flags: <defaults>
</compile_context>

<pallas_src>
import jax
import jax.numpy as jnp
import numpy as np
from jax.experimental import pallas as pl
from jax.experimental.pallas import tpu as pltpu


def _round_up(x, m):
    return ((x + m - 1) // m) * m


def _vmem_capacity_bytes():
    cap = 128 * 1024 * 1024  # v5e / v6e per-TC VMEM; v7x reports 64 MiB
    try:
        cap = int(getattr(pltpu.get_tpu_info(), "vmem_capacity_bytes", cap))
    except Exception:
        pass
    return cap


# ---------------------------------------------------------------------------
# Kernel 1: bucketize values against ptr (searchsorted-right minus one).
#   gid[i] = #{g in 1..B-1 : vals[i] >= ptr[g]}
# Used twice: once on edge source nodes (-> edge graph id, sized E) and once on
# node indices (-> batch id, sized N).  Memory-bound int32 elementwise work.
# ---------------------------------------------------------------------------
def _bucketize_kernel(ptr_ref, vals_ref, out_ref):
    vals = vals_ref[...]
    gid = jnp.zeros_like(vals)
    n_graphs = ptr_ref.shape[0] - 1          # static, small
    for g in range(1, n_graphs):
        gid = gid + (vals >= ptr_ref[g]).astype(jnp.int32)
    out_ref[...] = gid


def bucketize(vals, ptr, block_rows_max=1024):
    M = vals.shape[0]
    lanes = 128
    rows = pl.cdiv(M, lanes)
    block_rows = min(block_rows_max, _round_up(rows, 8))
    rows_pad = _round_up(rows, block_rows)
    total = rows_pad * lanes
    # single materialization: one pad, no zeros + .at[].set copies
    vals_pad = jnp.pad(vals.astype(jnp.int32), (0, total - M)).reshape(rows_pad, lanes)

    spec = pl.BlockSpec((block_rows, lanes), lambda i, ptr: (i, 0))
    out = pl.pallas_call(
        _bucketize_kernel,
        out_shape=jax.ShapeDtypeStruct((rows_pad, lanes), jnp.int32),
        grid_spec=pltpu.PrefetchScalarGridSpec(
            num_scalar_prefetch=1,
            grid=(rows_pad // block_rows,),
            in_specs=[spec],
            out_specs=spec),
        compiler_params=pltpu.CompilerParams(
            dimension_semantics=("parallel",)),
    )(ptr, vals_pad)
    return out.reshape(-1)[:M]


# ---------------------------------------------------------------------------
# Kernel 2: O(E) permutation row gather of the packed [E_pad, 8] int32 slab.
#   out[j, :] = packed[perm[j], :]
# Records are gathered with dynamic-sublane loads and assembled 8 at a time
# into an (8,8) register block (sublane-broadcast + select), so the kernel
# issues one vector store per 8 edges instead of one masked store per edge.
# ---------------------------------------------------------------------------
_GATHER_GROUP = 8


def _gather_kernel(perm_ref, packed_ref, out_ref):
    tb = out_ref.shape[0]
    G = _GATHER_GROUP
    base = pl.multiple_of(pl.program_id(0) * tb, tb)
    row_id = jax.lax.broadcasted_iota(jnp.int32, (G, 8), 0)

    def body(r, carry):
        off = base + r * G
        block = jnp.zeros((G, 8), jnp.int32)
        for s in range(G):                               # static, unrolled
            idx = perm_ref[off + s]                      # SMEM scalar read
            rec = packed_ref[pl.ds(idx, 1), :]           # dynamic-sublane (1,8) load
            block = jnp.where(row_id == s, rec, block)   # place record at row s
        out_ref[pl.ds(pl.multiple_of(r * G, G), G), :] = block
        return carry

    jax.lax.fori_loop(0, tb // G, body, 0, unroll=2)


def gather_edges(edge_index, cell_offset, perm):
    E = edge_index.shape[1]
    TB = min(512, _round_up(E, _GATHER_GROUP))
    E_pad = _round_up(E, TB)

    ei_t = edge_index.T.astype(jnp.int32)                                  # [E, 2]
    # reference semantics: float32 cell offsets; bitcast round-trips bits exactly
    co_bits = jax.lax.bitcast_convert_type(
        cell_offset.astype(jnp.float32), jnp.int32)                        # [E, 3]
    packed = jnp.concatenate(
        [ei_t, co_bits, jnp.zeros((E, 3), jnp.int32)], axis=1)             # [E, 8]
    packed = jnp.pad(packed, ((0, E_pad - E), (0, 0)))                     # one pad
    # padded perm entries gather row 0 into the padded tail; tail is sliced off
    perm_pad = jnp.pad(perm.astype(jnp.int32), (0, E_pad - E))

    # VMEM budget: under (8,128) tiling the slab's 8-lane rows pad to 128 lanes
    # (~512 B/edge, single-buffered) + double-buffered output tiles + slack.
    need = E_pad * 128 * 4 + 4 * TB * 128 * 4 + (4 << 20)
    vmem_limit = int(min(max(need, 32 << 20), 0.75 * _vmem_capacity_bytes()))
    # TODO(synk): for E large enough that the lane-padded slab exceeds this limit
    # (≈100K edges on v7x), keep the slab in HBM (memory_space=pl.ANY) and gather
    # per contiguous run with make_async_copy instead of holding it resident.

    out_spec = pl.BlockSpec((TB, 8), lambda j, perm: (j, 0))

    def run(slab_spec):
        return pl.pallas_call(
            _gather_kernel,
            out_shape=jax.ShapeDtypeStruct((E_pad, 8), jnp.int32),
            grid_spec=pltpu.PrefetchScalarGridSpec(
                num_scalar_prefetch=1,
                grid=(E_pad // TB,),
                in_specs=[slab_spec],
                out_specs=out_spec),
            compiler_params=pltpu.CompilerParams(
                dimension_semantics=("parallel",),
                vmem_limit_bytes=vmem_limit),
        )(perm_pad, packed)

    try:
        # constant index_map -> double buffering buys nothing; single-buffer the slab
        out = run(pl.BlockSpec((E_pad, 8), lambda j, perm: (0, 0),
                               pipeline_mode=pl.Buffered(1)))
    except Exception:
        # fallback: default (double-buffered) resident slab
        out = run(pl.BlockSpec((E_pad, 8), lambda j, perm: (0, 0)))

    out = out[:E]
    new_edge_index = out[:, 0:2].T                                         # [2, E] int32
    new_cell_offset = jax.lax.bitcast_convert_type(out[:, 2:5], jnp.float32)   # [E, 3]
    return new_edge_index, new_cell_offset


# ---------------------------------------------------------------------------
# FCG forward (include_si has no effect on the forward computation)
# ---------------------------------------------------------------------------
def fcg_forward(pos_batch, cell_vectors, edge_index, cell_offset, x, batch, ptr,
                include_si=False):
    del batch, include_si
    ptr = ptr.astype(jnp.int32)
    N = pos_batch.shape[0]

    # per-edge graph id and per-node batch id: two small memory-bound kernels,
    # each sized exactly to its own extent (E resp. N)
    edge_gid = bucketize(edge_index[0], ptr)
    node_batch = bucketize(jnp.arange(N, dtype=jnp.int32), ptr)

    # stable grouping permutation by graph id
    # TODO(synk): stable sort has no clean Pallas TPU primitive; plain-JAX argsort
    # replaces the previous O(E*B) one-hot counting-sort intermediate.
    perm = jnp.argsort(edge_gid, stable=True)

    # fused O(E) row gather of edge_index + cell_offset; the per-graph -start /
    # +start offsets cancel, so gathered values equal the inputs (torch semantics)
    new_edge_index, new_cell_offset = gather_edges(edge_index, cell_offset, perm)

    return dict(pos=pos_batch,
                x=x,
                unit_cell=cell_vectors,
                edge_index=new_edge_index,
                cell_offset=new_cell_offset,
                batch=node_batch,
                ptr=ptr)


# ---------------------------------------------------------------------------
if __name__ == "__main__":
    key = jax.random.PRNGKey(0)
    k1, k2, k3, k4, k5, k6, k7, k8 = jax.random.split(key, 8)

    # 2 graphs: 5 and 3 nodes, 8 edges each (shuffled together -> nontrivial perm)
    counts = [5, 3]
    B = len(counts)
    ptr = jnp.array(np.concatenate([[0], np.cumsum(counts)]), dtype=jnp.int32)  # [0,5,8]
    N = int(np.sum(counts))
    E_per = 8

    pos = jax.random.normal(k1, (N, 3), jnp.float32)
    x = jax.random.normal(k2, (N, 4), jnp.float32)
    cell_vectors = jax.random.normal(k3, (3 * B, 3), jnp.float32)

    src0 = jax.random.randint(k4, (E_per,), 0, 5)
    dst0 = jax.random.randint(k5, (E_per,), 0, 5)
    src1 = jax.random.randint(k6, (E_per,), 5, 8)
    dst1 = jax.random.randint(k7, (E_per,), 5, 8)
    edge_index = jnp.stack([jnp.concatenate([src0, src1]),
                            jnp.concatenate([dst0, dst1])]).astype(jnp.int32)
    E = edge_index.shape[1]
    shuffle = jax.random.permutation(k8, E)
    edge_index = edge_index[:, shuffle]
    cell_offset = (jax.random.randint(k1, (E, 3), -1, 2)).astype(jnp.float32)
    cell_offset = cell_offset[shuffle]
    batch_in = jnp.repeat(jnp.arange(B, dtype=jnp.int32), jnp.array(counts))

    out = fcg_forward(pos, cell_vectors, edge_index, cell_offset, x, batch_in, ptr)
    jax.tree_util.tree_map(jax.block_until_ready, out)

    # --- reference check (pure numpy re-implementation of the torch module) ---
    ei_np = np.asarray(edge_index)
    co_np = np.asarray(cell_offset)
    ptr_np = np.asarray(ptr)
    gid_np = np.searchsorted(ptr_np, ei_np[0], side="right") - 1
    perm_np = np.argsort(gid_np, kind="stable")
    ei_exp = ei_np[:, perm_np]          # local -start then +cum node counts == original values
    co_exp = co_np[perm_np]
    batch_exp = np.searchsorted(ptr_np, np.arange(N), side="right") - 1

    assert np.array_equal(np.asarray(out["edge_index"]), ei_exp)
    assert np.array_equal(np.asarray(out["cell_offset"]), co_exp)
    assert np.array_equal(np.asarray(out["batch"]), batch_exp)
    assert np.array_equal(np.asarray(out["ptr"]), ptr_np)
    assert np.allclose(np.asarray(out["pos"]), np.asarray(pos))
    assert np.allclose(np.asarray(out["x"]), np.asarray(x))
    assert np.allclose(np.asarray(out["unit_cell"]), np.asarray(cell_vectors))

    print("KERNEL_OK")
</pallas_src>

<mosaic_0001>
module attributes {stable_mosaic.version = 11 : i64} {
  func.func @_bucketize_kernel(%arg0: i32, %arg1: memref<3xi32, #tpu.memory_space<smem>>, %arg2: memref<8x128xi32, #tpu.memory_space<vmem>>, %arg3: memref<8x128xi32, #tpu.memory_space<vmem>>) attributes {dimension_semantics = [#tpu.dimension_semantics<parallel>], iteration_bounds = array<i64: 1>, scalar_prefetch = 1 : i64, scratch_operands = 0 : i64, tpu.core_type = #tpu.core_type<tc>, window_params = [{transform_indices = @transform_0, window_bounds = array<i64: 8, 128>}, {transform_indices = @transform_1, window_bounds = array<i64: 8, 128>}]} {
    %c0 = arith.constant 0 : index
    %c0_0 = arith.constant 0 : index
    %0 = vector.load %arg2[%c0, %c0_0] : memref<8x128xi32, #tpu.memory_space<vmem>>, vector<8x128xi32>
    %c0_i32 = arith.constant 0 : i32
    %1 = vector.broadcast %c0_i32 : i32 to vector<8x128xi32>
    %c1 = arith.constant 1 : index
    %2 = memref.load %arg1[%c1] : memref<3xi32, #tpu.memory_space<smem>>
    %3 = vector.broadcast %2 : i32 to vector<8x128xi32>
    %4 = arith.cmpi sge, %0, %3 : vector<8x128xi32>
    %5 = arith.extui %4 : vector<8x128xi1> to vector<8x128xi32>
    %6 = arith.addi %1, %5 : vector<8x128xi32>
    %c0_1 = arith.constant 0 : index
    %c0_2 = arith.constant 0 : index
    %7 = vector.load %arg3[%c0_1, %c0_2] : memref<8x128xi32, #tpu.memory_space<vmem>>, vector<8x128xi32>
    tpu.vector_store %arg3[%c0_1, %c0_2], %6 {strides = array<i32>} : memref<8x128xi32, #tpu.memory_space<vmem>>, vector<8x128xi32>,
    return
  }
  func.func @transform_0(%arg0: i32, %arg1: memref<3xi32, #tpu.memory_space<smem>>) -> (i32, i32) {
    %c0_i32 = arith.constant 0 : i32
    %c0_i32_0 = arith.constant 0 : i32
    return %arg0, %c0_i32 : i32, i32
  }
  func.func @transform_1(%arg0: i32, %arg1: memref<3xi32, #tpu.memory_space<smem>>) -> (i32, i32) {
    %c0_i32 = arith.constant 0 : i32
    %c0_i32_0 = arith.constant 0 : i32
    return %arg0, %c0_i32 : i32, i32
  }
}

</mosaic_0001>

<llo_original>
// kernel: tpu_custom_call.1
$region0: #{tpu_custom_call.1}
  #allocation0 [shape = 'u32[]', space=smem, size = 0x4, offset = 0x4, fixed_abs, tag = 'smem constant byte address 0x4 - core index']
  #allocation1 [shape = 'u32[144,128]{1,0:T(1,128)}', space=vmem, size = 0x12000, scoped, tag = 'internal scratch']
  #allocation2 [shape = 's32[1]{0}', space=sflag, size = 0x4, scoped, tag = 'scoped memory for tpu_custom_call.1']
  #allocation3 [shape = 'u8[512]{0}', space=smem, size = 0x200, scoped, tag = 'prefetched SMEM operand 0']
  %s0 = inlined_call_operand.hbm [shape: s32[3], index: 0, kind: input, shape index: {}]
  %s1 = inlined_call_operand.hbm [shape: s32[8,128], index: 1, kind: input, shape index: {}]
  %s2 = inlined_call_operand.hbm [shape: s32[8,128], index: 2, kind: output, shape index: {}]
  %s3 = sld [smem:[#allocation0]]
  $region18: #{tpu_custom_call.1} parent=0
    _
  %s5 = ssub.s32 1, %s3
  %s6 = scalar_select 0, %s5, %s3
  %8 = dma.hbm_to_smem %s0, 16, [#allocation3], [#allocation2]
  %9 = dma.done [#allocation2], 16
  %10 = sfence
  $region1: #{tpu_custom_call.1} parent=0
    #allocation4 [shape = 'u8[4096]{0}', space=vmem, size = 0x1000, scoped, tag = 'input window, operand 1, single buffered']
    #allocation5 [shape = 's32[1]{0}', space=sflag, size = 0x4, scoped, tag = 'scoped memory for tpu_custom_call.1']
    #allocation6 [shape = 's32[1]{0}', space=sflag, size = 0x4, scoped, tag = 'scoped memory for tpu_custom_call.1']
    #allocation7 [shape = 'u8[4096]{0}', space=vmem, size = 0x1000, scoped, tag = 'output window, operand 0, single buffered']
    %11 = vsyncpa [#allocation5], 0
    %12 = vsyncpa [#allocation6], 0
    // Predicated region
    $region2: #{tpu_custom_call.1} parent=1 // pred_check
      _
    $region3: #{tpu_custom_call.1} parent=1 // pred_check_branch
      %14 = sbr.rel (0) target = $region5
    $region4: #{tpu_custom_call.1} parent=1 // pred_region
      %s16 = ssub.s32 128, 128
      %17 = vsyncadd [#allocation5], %s16
      %s19 = sshll.u32 [#allocation4], 4
      %s20 = int_to_ptr.vmem [resolvable:$true] %s19
      %22 = dma.hbm_to_vmem [thread:$0]  %s1, 128, %s20, [#allocation5]
    $region5: #{tpu_custom_call.1} parent=1 // pred_fallthru
      _
    // Predicated region
    $region6: #{tpu_custom_call.1} parent=1 // pred_check
      _
    $region7: #{tpu_custom_call.1} parent=1 // pred_check_branch
      %24 = sbr.rel (0) target = $region9
    $region8: #{tpu_custom_call.1} parent=1 // pred_region
      %25 = dma.done [#allocation5], 128
    $region9: #{tpu_custom_call.1} parent=1 // pred_fallthru
      _
    %v26 = vld [vmem:[#allocation4] sm:$0xff]
    %s27 = sld [smem:[#allocation3 + $0x1]]
    %v28 = vstv %s27
    %vm29 = vcmp.ge.s32.totalorder %v26, %v28
    %v30 = vsel %vm29, 1, 0
    %31 = vst [vmem:[#allocation7] sm:$0xff] %v30
    // Predicated region
    $region10: #{tpu_custom_call.1} parent=1 // pred_check
      _
    $region11: #{tpu_custom_call.1} parent=1 // pred_check_branch
      %33 = sbr.rel (0) target = $region13
    $region12: #{tpu_custom_call.1} parent=1 // pred_region
      %s35 = ssub.s32 128, 128
      %36 = vsyncadd [#allocation6], %s35
      %s38 = sshll.u32 [#allocation7], 4
      %s39 = int_to_ptr.vmem [resolvable:$true] %s38
      %41 = dma.vmem_to_hbm [thread:$0]  %s39, 128, %s2, [#allocation6]
    $region13: #{tpu_custom_call.1} parent=1 // pred_fallthru
      _
    // Predicated region
    $region14: #{tpu_custom_call.1} parent=1 // pred_check
      _
    $region15: #{tpu_custom_call.1} parent=1 // pred_check_branch
      %43 = sbr.rel (0) target = $region17
    $region16: #{tpu_custom_call.1} parent=1 // pred_region
      %44 = dma.done [#allocation6], 128
    $region17: #{tpu_custom_call.1} parent=1 // pred_fallthru
      _
    %45 = vsyncpa [#allocation5], 1
    %46 = vsyncpa [#allocation6], 1

</llo_original>
